<compile_context>
chip_gen: v6e
topology: v6e:2x2x1
jax: 0.10.0
libtpu: 0.0.40
codegen_flags: <defaults>
</compile_context>

<pallas_src>
import functools

import jax
import jax.numpy as jnp
import numpy as np
from jax.experimental import pallas as pl
from jax.experimental.pallas import tpu as pltpu

BN_EPS = 1e-5
_VMEM_LIMIT_BYTES = 48 * 1024 * 1024   # < 64 MiB physical on v7x, << 128 MiB on v5e/v6e
_TILE_VMEM_BUDGET = 24 * 1024 * 1024   # per-step working-set budget used to size row tiles


def _pick_tile_h(h, w, cin, cout, in_isz, y_isz, vmem_budget=_TILE_VMEM_BUDGET):
    """Output rows per grid step.

    Whole image if its working set fits the VMEM budget; otherwise the largest
    divisor of H whose flattened tile (tile_h*W) is a multiple of 128 lanes
    (keeps output stores unmasked and tiles even).
    """
    # approx bytes per output lane: staged (9*Cin) matrix + ~2*Cin slab rows
    # (double-buffered) in compute dtype + double-buffered y tile + f32 acc.
    per_lane = (9 * cin + 2 * cin) * in_isz + 2 * cout * y_isz + cout * 4
    max_lanes = max(vmem_budget // per_lane, 128)
    if h * w <= max_lanes:
        return h
    for th in range(h, 0, -1):
        if h % th == 0 and th * w <= max_lanes and (th * w) % 128 == 0:
            return th
    return h


def _conv_relu_stats_kernel(slab_ref, w_ref, y_ref, sum_ref, ssq_ref, stage_ref,
                            *, width):
    """One (image, row-tile) step: 3x3 conv (pad=1) + ReLU + BN partials.

    slab_ref:  (Cin, Lp)      halo-row-padded, flattened input rows for the tile
    w_ref:     (Cout, 9*Cin)  dense conv weights, tap-major columns (k=dy*3+dx)
    y_ref:     (Cout, THW)    conv+ReLU tile (lane-dense: THW % 128 == 0 or full)
    sum_ref:   (Cout, 1)      per-(image, tile) BN sum partial
    ssq_ref:   (Cout, 1)      per-(image, tile) BN sum-of-squares partial
    stage_ref: (9*Cin, THW)   VMEM scratch holding the 9 shifted tap views
    """
    cin, _ = slab_ref.shape
    cout, thw = y_ref.shape
    hal = thw + 2 * width                                   # (tile_h + 2) * W

    # Output-column index of every lane of a per-dx view (independent of dy).
    # Lanes at the image's left/right edge would otherwise read the previous/
    # next row in the flattened layout; mask them instead of padding W.
    col = jax.lax.broadcasted_iota(jnp.int32, (cin, hal), 1) % width
    left_edge = col == 0
    right_edge = col == width - 1
    zero = jnp.zeros((), slab_ref.dtype)

    # Stage the 9 taps into one (9*Cin, THW) matrix.  Each dx lane shift and
    # its edge mask is computed once and reused for the 3 dy row offsets.
    # NOTE(v5e): these selects run in compute_dtype; keep compute_dtype=f32 on
    # v5e (its VPU has no bf16 path) and use bf16 only on v6e/v7x.
    for dx in range(3):
        v = slab_ref[:, dx:dx + hal]                        # static lane slice
        if dx == 0:
            v = jnp.where(left_edge, zero, v)               # left image edge
        elif dx == 2:
            v = jnp.where(right_edge, zero, v)              # right image edge
        for dy in range(3):
            k = dy * 3 + dx
            stage_ref[k * cin:(k + 1) * cin, :] = v[:, dy * width:dy * width + thw]

    # Single MXU matmul, contraction K = 9*Cin (accumulation stays in the MXU).
    acc = jnp.dot(w_ref[...], stage_ref[...], preferred_element_type=jnp.float32)
    y = jnp.maximum(acc, 0.0)                               # ReLU in f32
    y_ref[...] = y.astype(y_ref.dtype)

    # Per-(image, row-tile) BN partials from the f32 accumulator -> no
    # cross-step accumulation, so both grid axes stay "parallel".
    # NOTE: one-pass sum / sumsq; fine post-ReLU at these magnitudes.
    sum_ref[...] = jnp.sum(y, axis=1, keepdims=True)
    ssq_ref[...] = jnp.sum(y * y, axis=1, keepdims=True)


def _bn_apply_kernel(y_ref, bn_ref, o_ref):
    """Normalize a whole-image (Cout, H*W) block with per-channel mean/inv_std."""
    mean = bn_ref[0]        # (Cout, 1)
    inv_std = bn_ref[1]     # (Cout, 1)
    o_ref[...] = ((y_ref[...].astype(jnp.float32) - mean) * inv_std).astype(o_ref.dtype)


def sconv2d_forward(x, weight, *, compute_dtype=jnp.float32, tile_h=None):
    """x: (N, Cin, H, W) f32, weight: (Cout, Cin, 3, 3) f32 -> (N, Cout, H, W) f32."""
    n, cin, h, w = x.shape
    cout, cin2, kh, kw = weight.shape
    assert cin2 == cin and kh == 3 and kw == 3, "module uses kernel_size=3, padding=1"

    in_isz = np.dtype(compute_dtype).itemsize
    # Intermediate y: bf16 only when computing in bf16 (halves pass1-write /
    # pass2-read traffic); f32 otherwise so the f32 path stays exact.
    y_dtype = jnp.float32 if in_isz == 4 else jnp.bfloat16
    y_isz = np.dtype(y_dtype).itemsize

    if tile_h is None:
        tile_h = _pick_tile_h(h, w, cin, cout, in_isz, y_isz)
    assert h % tile_h == 0
    t_tiles = h // tile_h
    thw = tile_h * w
    assert thw % 128 == 0 or t_tiles == 1, "row tiles must be lane-dense"
    lp = (tile_h + 2) * w + 2

    # ---- layout prep (plain JAX; fuses under jit) ----
    # Zero-pad rows only; column padding is replaced by in-kernel edge masks.
    xp = jnp.pad(x, ((0, 0), (0, 0), (1, 1), (0, 0)))            # (N, Cin, H+2, W)
    if t_tiles == 1:
        slabs = xp.reshape(n, 1, cin, (h + 2) * w)               # no halo duplication
    else:
        slabs = jnp.stack(
            [xp[:, :, t * tile_h:t * tile_h + tile_h + 2, :] for t in range(t_tiles)],
            axis=1).reshape(n, t_tiles, cin, (tile_h + 2) * w)
    slabs = jnp.pad(slabs, ((0, 0), (0, 0), (0, 0), (1, 1)))     # (N, T, Cin, Lp)
    slabs = slabs.astype(compute_dtype)

    # (Cout, Cin, 3, 3) -> dense (Cout, 9*Cin); column index = (dy*3+dx)*Cin + ci.
    w_dense = jnp.transpose(weight, (0, 2, 3, 1)).reshape(cout, 9 * cin)
    w_dense = w_dense.astype(compute_dtype)

    flops1 = 2 * n * h * w * 9 * cin * cout
    bytes1 = int(slabs.size * in_isz + w_dense.size * in_isz
                 + n * cout * h * w * y_isz + 2 * n * t_tiles * cout * 4)

    # ---- pass 1: conv + ReLU + per-(image, tile) BN partials ----
    y_flat, psum, pssq = pl.pallas_call(
        functools.partial(_conv_relu_stats_kernel, width=w),
        grid=(n, t_tiles),
        in_specs=[
            pl.BlockSpec((None, None, cin, lp), lambda i, t: (i, t, 0, 0)),
            pl.BlockSpec((cout, 9 * cin), lambda i, t: (0, 0)),
        ],
        out_specs=[
            pl.BlockSpec((None, cout, thw), lambda i, t: (i, 0, t)),
            pl.BlockSpec((None, None, cout, 1), lambda i, t: (i, t, 0, 0)),
            pl.BlockSpec((None, None, cout, 1), lambda i, t: (i, t, 0, 0)),
        ],
        out_shape=(
            jax.ShapeDtypeStruct((n, cout, h * w), y_dtype),
            jax.ShapeDtypeStruct((n, t_tiles, cout, 1), jnp.float32),
            jax.ShapeDtypeStruct((n, t_tiles, cout, 1), jnp.float32),
        ),
        scratch_shapes=[pltpu.VMEM((9 * cin, thw), compute_dtype)],
        compiler_params=pltpu.CompilerParams(
            dimension_semantics=("parallel", "parallel"),
            vmem_limit_bytes=_VMEM_LIMIT_BYTES),
        cost_estimate=pl.CostEstimate(
            flops=flops1, transcendentals=0, bytes_accessed=bytes1),
    )(slabs, w_dense)

    # ---- tiny cross-(image, tile) reduction + rsqrt (plain JAX; O(Cout)) ----
    m_total = n * h * w
    total_sum = jnp.sum(psum, axis=(0, 1))                        # (Cout, 1)
    total_ssq = jnp.sum(pssq, axis=(0, 1))                        # (Cout, 1)
    mean = total_sum / m_total
    var = jnp.maximum(total_ssq / m_total - mean * mean, 0.0)     # biased variance
    inv_std = jax.lax.rsqrt(var + BN_EPS)
    bn = jnp.stack([mean, inv_std], axis=0)                       # (2, Cout, 1)

    # ---- pass 2: normalize whole images; output already (N, Cout, H*W) ----
    bytes2 = int(n * cout * h * w * (y_isz + 4) + bn.size * 4)
    out_flat = pl.pallas_call(
        _bn_apply_kernel,
        grid=(n,),
        in_specs=[
            pl.BlockSpec((None, cout, h * w), lambda i: (i, 0, 0)),
            pl.BlockSpec((2, cout, 1), lambda i: (0, 0, 0)),
        ],
        out_specs=pl.BlockSpec((None, cout, h * w), lambda i: (i, 0, 0)),
        out_shape=jax.ShapeDtypeStruct((n, cout, h * w), jnp.float32),
        compiler_params=pltpu.CompilerParams(
            dimension_semantics=("parallel",),
            vmem_limit_bytes=_VMEM_LIMIT_BYTES),
        cost_estimate=pl.CostEstimate(
            flops=2 * n * cout * h * w, transcendentals=0, bytes_accessed=bytes2),
    )(y_flat, bn)

    # Channels already leading -> free reshape, no transpose.
    return out_flat.reshape(n, cout, h, w)


def _reference(x, weight):
    """Pure-JAX reference: conv(pad=1) -> ReLU -> BN (biased var, eps=1e-5)."""
    y = jax.lax.conv_general_dilated(
        x, weight, window_strides=(1, 1), padding=((1, 1), (1, 1)),
        dimension_numbers=("NCHW", "OIHW", "NCHW"))
    y = jnp.maximum(y, 0.0)
    mean = jnp.mean(y, axis=(0, 2, 3), keepdims=True)
    var = jnp.mean((y - mean) ** 2, axis=(0, 2, 3), keepdims=True)
    return (y - mean) * jax.lax.rsqrt(var + BN_EPS)


if __name__ == "__main__":
    key = jax.random.PRNGKey(0)
    kx, kw_, kx2 = jax.random.split(key, 3)

    N, CIN, COUT, H, W, K = 2, 4, 8, 16, 16, 3

    x = jax.random.normal(kx, (N, CIN, H, W), dtype=jnp.float32)
    fan_in = CIN * K * K
    bound = 1.0 / np.sqrt(fan_in)
    weight = jax.random.uniform(
        kw_, (COUT, CIN, K, K), dtype=jnp.float32, minval=-bound, maxval=bound)

    # f32 path (matches the PyTorch module numerically).
    fwd_f32 = jax.jit(functools.partial(sconv2d_forward, compute_dtype=jnp.float32))
    out = jax.block_until_ready(fwd_f32(x, weight))
    ref = _reference(x, weight)
    assert out.shape == (N, COUT, H, W)
    np.testing.assert_allclose(np.asarray(out), np.asarray(ref), atol=1e-4, rtol=1e-4)

    # bf16 MXU operands + bf16 intermediate y (v6e/v7x); BN statistics stay f32.
    fwd_bf16 = jax.jit(functools.partial(sconv2d_forward, compute_dtype=jnp.bfloat16))
    out_bf16 = jax.block_until_ready(fwd_bf16(x, weight))
    np.testing.assert_allclose(np.asarray(out_bf16), np.asarray(ref), atol=5e-2, rtol=5e-2)

    # Multi-row-tile path (grid over row tiles, per-tile BN partials, both
    # grid axes "parallel"): H=32 split into tiles of 8 rows.
    x2 = jax.random.normal(kx2, (N, CIN, 32, W), dtype=jnp.float32)
    fwd_tiled = jax.jit(functools.partial(sconv2d_forward, tile_h=8))
    out2 = jax.block_until_ready(fwd_tiled(x2, weight))
    ref2 = _reference(x2, weight)
    np.testing.assert_allclose(np.asarray(out2), np.asarray(ref2), atol=1e-4, rtol=1e-4)

    print("KERNEL_OK")
</pallas_src>

<mosaic_0001>
module attributes {stable_mosaic.version = 11 : i64} {
  func.func @_conv_relu_stats_kernel(%arg0: i32, %arg1: i32, %arg2: memref<1x1x4x290xf32, #tpu.memory_space<vmem>>, %arg3: memref<8x36xf32, #tpu.memory_space<vmem>>, %arg4: memref<1x8x256xf32, #tpu.memory_space<vmem>>, %arg5: memref<1x1x8x1xf32, #tpu.memory_space<vmem>>, %arg6: memref<1x1x8x1xf32, #tpu.memory_space<vmem>>, %arg7: memref<36x256xf32, #tpu.memory_space<vmem>>) attributes {dimension_semantics = [#tpu.dimension_semantics<parallel>, #tpu.dimension_semantics<parallel>], iteration_bounds = array<i64: 2, 1>, scalar_prefetch = 0 : i64, scratch_operands = 1 : i64, tpu.core_type = #tpu.core_type<tc>, window_params = [{transform_indices = @transform_0, window_bounds = array<i64: 1, 1, 4, 290>}, {pipeline_mode = #tpu.pipeline_mode<synchronous>, transform_indices = @transform_1, window_bounds = array<i64: 8, 36>}, {transform_indices = @transform_2, window_bounds = array<i64: 1, 8, 256>}, {transform_indices = @transform_3, window_bounds = array<i64: 1, 1, 8, 1>}, {transform_indices = @transform_4, window_bounds = array<i64: 1, 1, 8, 1>}]} {
    %0 = tpu.iota {dimensions = array<i32: 1>} : vector<4x288xi32>
    %c16_i32 = arith.constant 16 : i32
    %c0_i32 = arith.constant 0 : i32
    %1 = arith.cmpi eq, %c16_i32, %c0_i32 : i32
    %c1_i32 = arith.constant 1 : i32
    %2 = arith.select %1, %c1_i32, %c16_i32 : i32
    %3 = vector.broadcast %2 : i32 to vector<4x288xi32>
    %4 = arith.remsi %0, %3 : vector<4x288xi32>
    %c0_i32_0 = arith.constant 0 : i32
    %5 = vector.broadcast %c0_i32_0 : i32 to vector<4x288xi32>
    %6 = arith.cmpi ne, %4, %5 : vector<4x288xi32>
    %c0_i32_1 = arith.constant 0 : i32
    %7 = vector.broadcast %c0_i32_1 : i32 to vector<4x288xi32>
    %8 = arith.cmpi slt, %4, %7 : vector<4x288xi32>
    %c0_i32_2 = arith.constant 0 : i32
    %9 = arith.cmpi slt, %2, %c0_i32_2 : i32
    %10 = vector.broadcast %9 : i1 to vector<4x288xi1>
    %11 = vector.broadcast %10 : vector<4x288xi1> to vector<4x288xi1>
    %12 = arith.xori %8, %11 : vector<4x288xi1>
    %13 = arith.andi %12, %6 : vector<4x288xi1>
    %14 = vector.broadcast %2 : i32 to vector<4x288xi32>
    %15 = arith.addi %4, %14 : vector<4x288xi32>
    %16 = arith.select %13, %15, %4 : vector<4x288xi1>, vector<4x288xi32>
    %c0_i32_3 = arith.constant 0 : i32
    %17 = vector.broadcast %c0_i32_3 : i32 to vector<4x288xi32>
    %18 = arith.cmpi eq, %16, %17 : vector<4x288xi32>
    %c15_i32 = arith.constant 15 : i32
    %19 = vector.broadcast %c15_i32 : i32 to vector<4x288xi32>
    %20 = arith.cmpi eq, %16, %19 : vector<4x288xi32>
    %c0 = arith.constant 0 : index
    %c0_4 = arith.constant 0 : index
    %c0_5 = arith.constant 0 : index
    %c0_6 = arith.constant 0 : index
    %21 = vector.load %arg2[%c0, %c0_4, %c0_5, %c0_6] : memref<1x1x4x290xf32, #tpu.memory_space<vmem>>, vector<1x1x4x288xf32>
    %22 = vector.shape_cast %21 : vector<1x1x4x288xf32> to vector<4x288xf32>
    %cst = arith.constant 0.000000e+00 : f32
    %23 = vector.broadcast %cst : f32 to vector<4x288xf32>
    %24 = arith.select %18, %23, %22 : vector<4x288xi1>, vector<4x288xf32>
    %25 = vector.extract_strided_slice %24 {offsets = [0, 0], sizes = [4, 256], strides = [1, 1]} : vector<4x288xf32> to vector<4x256xf32>
    %c0_7 = arith.constant 0 : index
    %c0_8 = arith.constant 0 : index
    %26 = vector.load %arg7[%c0_7, %c0_8] : memref<36x256xf32, #tpu.memory_space<vmem>>, vector<4x256xf32>
    tpu.vector_store %arg7[%c0_7, %c0_8], %25 {strides = array<i32>} : memref<36x256xf32, #tpu.memory_space<vmem>>, vector<4x256xf32>,
    %27 = vector.extract_strided_slice %24 {offsets = [0, 16], sizes = [4, 256], strides = [1, 1]} : vector<4x288xf32> to vector<4x256xf32>
    %c12 = arith.constant 12 : index
    %c0_9 = arith.constant 0 : index
    %28 = vector.load %arg7[%c12, %c0_9] : memref<36x256xf32, #tpu.memory_space<vmem>>, vector<4x256xf32>
    tpu.vector_store %arg7[%c12, %c0_9], %27 {strides = array<i32>} : memref<36x256xf32, #tpu.memory_space<vmem>>, vector<4x256xf32>,
    %29 = vector.extract_strided_slice %24 {offsets = [0, 32], sizes = [4, 256], strides = [1, 1]} : vector<4x288xf32> to vector<4x256xf32>
    %c24 = arith.constant 24 : index
    %c0_10 = arith.constant 0 : index
    %30 = vector.load %arg7[%c24, %c0_10] : memref<36x256xf32, #tpu.memory_space<vmem>>, vector<4x256xf32>
    tpu.vector_store %arg7[%c24, %c0_10], %29 {strides = array<i32>} : memref<36x256xf32, #tpu.memory_space<vmem>>, vector<4x256xf32>,
    %c0_11 = arith.constant 0 : index
    %c0_12 = arith.constant 0 : index
    %c0_13 = arith.constant 0 : index
    %c1 = arith.constant 1 : index
    %31 = vector.load %arg2[%c0_11, %c0_12, %c0_13, %c1] : memref<1x1x4x290xf32, #tpu.memory_space<vmem>>, vector<1x1x4x288xf32>
    %32 = vector.shape_cast %31 : vector<1x1x4x288xf32> to vector<4x288xf32>
    %33 = vector.extract_strided_slice %32 {offsets = [0, 0], sizes = [4, 256], strides = [1, 1]} : vector<4x288xf32> to vector<4x256xf32>
    %c4 = arith.constant 4 : index
    %c0_14 = arith.constant 0 : index
    %34 = vector.load %arg7[%c4, %c0_14] : memref<36x256xf32, #tpu.memory_space<vmem>>, vector<4x256xf32>
    tpu.vector_store %arg7[%c4, %c0_14], %33 {strides = array<i32>} : memref<36x256xf32, #tpu.memory_space<vmem>>, vector<4x256xf32>,
    %35 = vector.extract_strided_slice %32 {offsets = [0, 16], sizes = [4, 256], strides = [1, 1]} : vector<4x288xf32> to vector<4x256xf32>
    %c16 = arith.constant 16 : index
    %c0_15 = arith.constant 0 : index
    %36 = vector.load %arg7[%c16, %c0_15] : memref<36x256xf32, #tpu.memory_space<vmem>>, vector<4x256xf32>
    tpu.vector_store %arg7[%c16, %c0_15], %35 {strides = array<i32>} : memref<36x256xf32, #tpu.memory_space<vmem>>, vector<4x256xf32>,
    %37 = vector.extract_strided_slice %32 {offsets = [0, 32], sizes = [4, 256], strides = [1, 1]} : vector<4x288xf32> to vector<4x256xf32>
    %c28 = arith.constant 28 : index
    %c0_16 = arith.constant 0 : index
    %38 = vector.load %arg7[%c28, %c0_16] : memref<36x256xf32, #tpu.memory_space<vmem>>, vector<4x256xf32>
    tpu.vector_store %arg7[%c28, %c0_16], %37 {strides = array<i32>} : memref<36x256xf32, #tpu.memory_space<vmem>>, vector<4x256xf32>,
    %c0_17 = arith.constant 0 : index
    %c0_18 = arith.constant 0 : index
    %c0_19 = arith.constant 0 : index
    %c2 = arith.constant 2 : index
    %39 = vector.load %arg2[%c0_17, %c0_18, %c0_19, %c2] : memref<1x1x4x290xf32, #tpu.memory_space<vmem>>, vector<1x1x4x288xf32>
    %40 = vector.shape_cast %39 : vector<1x1x4x288xf32> to vector<4x288xf32>
    %cst_20 = arith.constant 0.000000e+00 : f32
    %41 = vector.broadcast %cst_20 : f32 to vector<4x288xf32>
    %42 = arith.select %20, %41, %40 : vector<4x288xi1>, vector<4x288xf32>
    %43 = vector.extract_strided_slice %42 {offsets = [0, 0], sizes = [4, 256], strides = [1, 1]} : vector<4x288xf32> to vector<4x256xf32>
    %c8 = arith.constant 8 : index
    %c0_21 = arith.constant 0 : index
    %44 = vector.load %arg7[%c8, %c0_21] : memref<36x256xf32, #tpu.memory_space<vmem>>, vector<4x256xf32>
    tpu.vector_store %arg7[%c8, %c0_21], %43 {strides = array<i32>} : memref<36x256xf32, #tpu.memory_space<vmem>>, vector<4x256xf32>,
    %45 = vector.extract_strided_slice %42 {offsets = [0, 16], sizes = [4, 256], strides = [1, 1]} : vector<4x288xf32> to vector<4x256xf32>
    %c20 = arith.constant 20 : index
    %c0_22 = arith.constant 0 : index
    %46 = vector.load %arg7[%c20, %c0_22] : memref<36x256xf32, #tpu.memory_space<vmem>>, vector<4x256xf32>
    tpu.vector_store %arg7[%c20, %c0_22], %45 {strides = array<i32>} : memref<36x256xf32, #tpu.memory_space<vmem>>, vector<4x256xf32>,
    %47 = vector.extract_strided_slice %42 {offsets = [0, 32], sizes = [4, 256], strides = [1, 1]} : vector<4x288xf32> to vector<4x256xf32>
    %c32 = arith.constant 32 : index
    %c0_23 = arith.constant 0 : index
    %48 = vector.load %arg7[%c32, %c0_23] : memref<36x256xf32, #tpu.memory_space<vmem>>, vector<4x256xf32>
    tpu.vector_store %arg7[%c32, %c0_23], %47 {strides = array<i32>} : memref<36x256xf32, #tpu.memory_space<vmem>>, vector<4x256xf32>,
    %c0_24 = arith.constant 0 : index
    %c0_25 = arith.constant 0 : index
    %49 = vector.load %arg3[%c0_24, %c0_25] : memref<8x36xf32, #tpu.memory_space<vmem>>, vector<8x36xf32>
    %c0_26 = arith.constant 0 : index
    %c0_27 = arith.constant 0 : index
    %50 = vector.load %arg7[%c0_26, %c0_27] : memref<36x256xf32, #tpu.memory_space<vmem>>, vector<36x256xf32>
    %cst_28 = arith.constant dense<0.000000e+00> : vector<8x256xf32>
    %51 = tpu.matmul %49, %50, %cst_28 {dimension_numbers = #tpu.dot_dimension_numbers<[1], [0], [0], [1], [0, 0, 1, 1], [], []>} : vector<8x36xf32>, vector<36x256xf32>, vector<8x256xf32> -> vector<8x256xf32>
    %cst_29 = arith.constant 0.000000e+00 : f32
    %52 = vector.broadcast %cst_29 : f32 to vector<8x256xf32>
    %53 = arith.maximumf %51, %52 : vector<8x256xf32>
    %c0_30 = arith.constant 0 : index
    %c0_31 = arith.constant 0 : index
    %c0_32 = arith.constant 0 : index
    %54 = vector.load %arg4[%c0_30, %c0_31, %c0_32] : memref<1x8x256xf32, #tpu.memory_space<vmem>>, vector<1x8x256xf32>
    %55 = vector.shape_cast %54 : vector<1x8x256xf32> to vector<8x256xf32>
    %56 = vector.shape_cast %53 : vector<8x256xf32> to vector<1x8x256xf32>
    tpu.vector_store %arg4[%c0_30, %c0_31, %c0_32], %56 {strides = array<i32>} : memref<1x8x256xf32, #tpu.memory_space<vmem>>, vector<1x8x256xf32>,
    %cst_33 = arith.constant dense<0.000000e+00> : vector<8xf32>
    %57 = vector.multi_reduction <add>, %53, %cst_33 [1] : vector<8x256xf32> to vector<8xf32>
    %58 = vector.shape_cast %57 : vector<8xf32> to vector<8x1xf32>
    %c0_34 = arith.constant 0 : index
    %c0_35 = arith.constant 0 : index
    %c0_36 = arith.constant 0 : index
    %c0_37 = arith.constant 0 : index
    %59 = vector.load %arg5[%c0_34, %c0_35, %c0_36, %c0_37] : memref<1x1x8x1xf32, #tpu.memory_space<vmem>>, vector<1x1x8x1xf32>
    %60 = vector.shape_cast %59 : vector<1x1x8x1xf32> to vector<8x1xf32>
    %61 = vector.shape_cast %58 : vector<8x1xf32> to vector<1x1x8x1xf32>
    tpu.vector_store %arg5[%c0_34, %c0_35, %c0_36, %c0_37], %61 {strides = array<i32>} : memref<1x1x8x1xf32, #tpu.memory_space<vmem>>, vector<1x1x8x1xf32>,
    %62 = arith.mulf %53, %53 : vector<8x256xf32>
    %cst_38 = arith.constant dense<0.000000e+00> : vector<8xf32>
    %63 = vector.multi_reduction <add>, %62, %cst_38 [1] : vector<8x256xf32> to vector<8xf32>
    %64 = vector.shape_cast %63 : vector<8xf32> to vector<8x1xf32>
    %c0_39 = arith.constant 0 : index
    %c0_40 = arith.constant 0 : index
    %c0_41 = arith.constant 0 : index
    %c0_42 = arith.constant 0 : index
    %65 = vector.load %arg6[%c0_39, %c0_40, %c0_41, %c0_42] : memref<1x1x8x1xf32, #tpu.memory_space<vmem>>, vector<1x1x8x1xf32>
    %66 = vector.shape_cast %65 : vector<1x1x8x1xf32> to vector<8x1xf32>
    %67 = vector.shape_cast %64 : vector<8x1xf32> to vector<1x1x8x1xf32>
    tpu.vector_store %arg6[%c0_39, %c0_40, %c0_41, %c0_42], %67 {strides = array<i32>} : memref<1x1x8x1xf32, #tpu.memory_space<vmem>>, vector<1x1x8x1xf32>,
    return
  }
  func.func @transform_0(%arg0: i32, %arg1: i32) -> (i32, i32, i32, i32) {
    %c0_i32 = arith.constant 0 : i32
    %c0_i32_0 = arith.constant 0 : i32
    %c0_i32_1 = arith.constant 0 : i32
    return %arg0, %arg1, %c0_i32, %c0_i32_0 : i32, i32, i32, i32
  }
  func.func @transform_1(%arg0: i32, %arg1: i32) -> (i32, i32) {
    %c0_i32 = arith.constant 0 : i32
    %c0_i32_0 = arith.constant 0 : i32
    %c0_i32_1 = arith.constant 0 : i32
    return %c0_i32, %c0_i32_0 : i32, i32
  }
  func.func @transform_2(%arg0: i32, %arg1: i32) -> (i32, i32, i32) {
    %c0_i32 = arith.constant 0 : i32
    %c0_i32_0 = arith.constant 0 : i32
    return %arg0, %c0_i32, %arg1 : i32, i32, i32
  }
  func.func @transform_3(%arg0: i32, %arg1: i32) -> (i32, i32, i32, i32) {
    %c0_i32 = arith.constant 0 : i32
    %c0_i32_0 = arith.constant 0 : i32
    %c0_i32_1 = arith.constant 0 : i32
    return %arg0, %arg1, %c0_i32, %c0_i32_0 : i32, i32, i32, i32
  }
  func.func @transform_4(%arg0: i32, %arg1: i32) -> (i32, i32, i32, i32) {
    %c0_i32 = arith.constant 0 : i32
    %c0_i32_0 = arith.constant 0 : i32
    %c0_i32_1 = arith.constant 0 : i32
    return %arg0, %arg1, %c0_i32, %c0_i32_0 : i32, i32, i32, i32
  }
}

module attributes {stable_mosaic.version = 11 : i64} {
  func.func @_bn_apply_kernel(%arg0: i32, %arg1: memref<1x8x256xf32, #tpu.memory_space<vmem>>, %arg2: memref<2x8x1xf32, #tpu.memory_space<vmem>>, %arg3: memref<1x8x256xf32, #tpu.memory_space<vmem>>) attributes {dimension_semantics = [#tpu.dimension_semantics<parallel>], iteration_bounds = array<i64: 2>, scalar_prefetch = 0 : i64, scratch_operands = 0 : i64, tpu.core_type = #tpu.core_type<tc>, window_params = [{transform_indices = @transform_0, window_bounds = array<i64: 1, 8, 256>}, {pipeline_mode = #tpu.pipeline_mode<synchronous>, transform_indices = @transform_1, window_bounds = array<i64: 2, 8, 1>}, {transform_indices = @transform_2, window_bounds = array<i64: 1, 8, 256>}]} {
    %c0 = arith.constant 0 : index
    %c0_0 = arith.constant 0 : index
    %c0_1 = arith.constant 0 : index
    %0 = vector.load %arg2[%c0, %c0_0, %c0_1] : memref<2x8x1xf32, #tpu.memory_space<vmem>>, vector<1x8x1xf32>
    %1 = vector.shape_cast %0 : vector<1x8x1xf32> to vector<8x1xf32>
    %c1 = arith.constant 1 : index
    %c0_2 = arith.constant 0 : index
    %c0_3 = arith.constant 0 : index
    %2 = vector.load %arg2[%c1, %c0_2, %c0_3] : memref<2x8x1xf32, #tpu.memory_space<vmem>>, vector<1x8x1xf32>
    %3 = vector.shape_cast %2 : vector<1x8x1xf32> to vector<8x1xf32>
    %c0_4 = arith.constant 0 : index
    %c0_5 = arith.constant 0 : index
    %c0_6 = arith.constant 0 : index
    %4 = vector.load %arg1[%c0_4, %c0_5, %c0_6] : memref<1x8x256xf32, #tpu.memory_space<vmem>>, vector<1x8x256xf32>
    %5 = vector.shape_cast %4 : vector<1x8x256xf32> to vector<8x256xf32>
    %6 = vector.broadcast %1 : vector<8x1xf32> to vector<8x256xf32>
    %7 = arith.subf %5, %6 : vector<8x256xf32>
    %8 = vector.broadcast %3 : vector<8x1xf32> to vector<8x256xf32>
    %9 = arith.mulf %7, %8 : vector<8x256xf32>
    %c0_7 = arith.constant 0 : index
    %c0_8 = arith.constant 0 : index
    %c0_9 = arith.constant 0 : index
    %10 = vector.load %arg3[%c0_7, %c0_8, %c0_9] : memref<1x8x256xf32, #tpu.memory_space<vmem>>, vector<1x8x256xf32>
    %11 = vector.shape_cast %10 : vector<1x8x256xf32> to vector<8x256xf32>
    %12 = vector.shape_cast %9 : vector<8x256xf32> to vector<1x8x256xf32>
    tpu.vector_store %arg3[%c0_7, %c0_8, %c0_9], %12 {strides = array<i32>} : memref<1x8x256xf32, #tpu.memory_space<vmem>>, vector<1x8x256xf32>,
    return
  }
  func.func @transform_0(%arg0: i32) -> (i32, i32, i32) {
    %c0_i32 = arith.constant 0 : i32
    %c0_i32_0 = arith.constant 0 : i32
    %c0_i32_1 = arith.constant 0 : i32
    return %arg0, %c0_i32, %c0_i32_0 : i32, i32, i32
  }
  func.func @transform_1(%arg0: i32) -> (i32, i32, i32) {
    %c0_i32 = arith.constant 0 : i32
    %c0_i32_0 = arith.constant 0 : i32
    %c0_i32_1 = arith.constant 0 : i32
    %c0_i32_2 = arith.constant 0 : i32
    return %c0_i32, %c0_i32_0, %c0_i32_1 : i32, i32, i32
  }
  func.func @transform_2(%arg0: i32) -> (i32, i32, i32) {
    %c0_i32 = arith.constant 0 : i32
    %c0_i32_0 = arith.constant 0 : i32
    %c0_i32_1 = arith.constant 0 : i32
    return %arg0, %c0_i32, %c0_i32_0 : i32, i32, i32
  }
}

</mosaic_0001>

<llo_original>
// kernel: sconv2d_forward.3
$region0: #{sconv2d_forward.3}
  #allocation0 [shape = 'u32[]', space=smem, size = 0x4, offset = 0x4, fixed_abs, tag = 'smem constant byte address 0x4 - core index']
  #allocation1 [shape = 'u32[144,128]{1,0:T(1,128)}', space=vmem, size = 0x12000, scoped, tag = 'internal scratch']
  %s0 = inlined_call_operand.vmem [shape: f32[2,8,256], index: 0, kind: input, shape index: {}]
  %s1 = inlined_call_operand.vmem [shape: f32[2,8,1], index: 1, kind: input, shape index: {}]
  %s2 = inlined_call_operand.vmem [shape: f32[2,8,256], index: 2, kind: output, shape index: {}]
  %s3 = sld [smem:[#allocation0]]
  $region41: #{sconv2d_forward.3} parent=0
    _
  %s5 = ssub.s32 1, %s3
  %s6 = scalar_select 0, %s5, %s3
  loop: start=0, step=1, limit=4
  $region2: #{sconv2d_forward.3} parent=0 // loop_pre_header
    _
  $region3: #{sconv2d_forward.3} parent=0 // loop_header
    %s8 = sphi 0, %s12
    %p9 = scmp.ge.s32.totalorder %s8, 4
    %s18 = sphi 0, %s20
    %s21 = sphi 0, %s18
    %s22 = sphi 0, %s21
    %s38 = sphi 0, %s22
    %s42 = sphi 0, %s42
    %s44 = sphi 0, %s42
    %s45 = sphi 0, %s44
    %s59 = sphi 0, %s45
    %s65 = sphi 0, %s67
    %s68 = sphi 0, %s65
    %s69 = sphi 0, %s68
    %s85 = sphi 0, %s69
  $region4: #{sconv2d_forward.3} parent=0 // loop_header_branch
    %11 = sbr.rel (%p9) target = $region8
  $region5: #{sconv2d_forward.3} parent=0 // loop_body
    %s13 = ssub.s32 %s8, 1
    %s14 = ssub.s32 %s8, 2
    %s15 = sadd.s32 %s8, 1
    %s16 = ssub.s32 %s8, %s15
    %p17 = scmp.eq.s32.totalorder %s16, 0
    %s19 = sadd.s32 %s18, 1
    %s20 = scalar_select %p17, %s18, %s19
    %p23 = pneg %p17
    %p24 = scmp.eq.s32.totalorder %s8, 1
    %p25 = por %p23, %p24
    %p26 = scmp.ne.s32.totalorder %s18, %s21
    %p27 = scmp.eq.s32.totalorder %s8, 0
    %p28 = por %p26, %p27
    %p29 = scmp.ne.s32.totalorder %s18, %s21
    %p30 = scmp.eq.s32.totalorder %s13, 1
    %p31 = por %p29, %p30
    %p32 = scmp.ne.s32.totalorder %s21, %s22
    %p33 = scmp.eq.s32.totalorder %s13, 0
    %p34 = por %p32, %p33
    %p35 = scmp.ne.s32.totalorder %s21, %s22
    %p36 = scmp.eq.s32.totalorder %s14, 1
    %p37 = por %p35, %p36
    %p39 = scmp.ne.s32.totalorder %s22, %s38
    %p40 = scmp.eq.s32.totalorder %s14, 0
    %p41 = por %p39, %p40
    %s43 = sadd.s32 %s42, 1
    %p46 = scmp.eq.s32.totalorder %s8, 1
    %p47 = scmp.ne.s32.totalorder %s42, %s44
    %p48 = scmp.eq.s32.totalorder %s8, 0
    %p49 = por %p47, %p48
    %p50 = scmp.ne.s32.totalorder %s42, %s44
    %p51 = scmp.eq.s32.totalorder %s13, 1
    %p52 = por %p50, %p51
    %p53 = scmp.ne.s32.totalorder %s44, %s45
    %p54 = scmp.eq.s32.totalorder %s13, 0
    %p55 = por %p53, %p54
    %p56 = scmp.ne.s32.totalorder %s44, %s45
    %p57 = scmp.eq.s32.totalorder %s14, 1
    %p58 = por %p56, %p57
    %p60 = scmp.ne.s32.totalorder %s45, %s59
    %p61 = scmp.eq.s32.totalorder %s14, 0
    %p62 = por %p60, %p61
    %s63 = ssub.s32 %s8, %s15
    %p64 = scmp.eq.s32.totalorder %s63, 0
    %s66 = sadd.s32 %s65, 1
    %s67 = scalar_select %p64, %s65, %s66
    %p70 = pneg %p64
    %p71 = scmp.eq.s32.totalorder %s8, 1
    %p72 = por %p70, %p71
    %p73 = scmp.ne.s32.totalorder %s65, %s68
    %p74 = scmp.eq.s32.totalorder %s8, 0
    %p75 = por %p73, %p74
    %p76 = scmp.ne.s32.totalorder %s65, %s68
    %p77 = scmp.eq.s32.totalorder %s13, 1
    %p78 = por %p76, %p77
    %p79 = scmp.ne.s32.totalorder %s68, %s69
    %p80 = scmp.eq.s32.totalorder %s13, 0
    %p81 = por %p79, %p80
    %p82 = scmp.ne.s32.totalorder %s68, %s69
    %p83 = scmp.eq.s32.totalorder %s14, 1
    %p84 = por %p82, %p83
    %p86 = scmp.ne.s32.totalorder %s69, %s85
    %p87 = scmp.eq.s32.totalorder %s14, 0
    %p88 = por %p86, %p87
    %p89 = scmp.le.s32.totalorder 1, %s8
    %p90 = scmp.lt.s32.totalorder %s8, 3
    %p91 = pnand %p89, %p90
    %p92 = pneg %p91
    // Predicated region
    $region9: #{sconv2d_forward.3} parent=5 // pred_check
      _
    $region10: #{sconv2d_forward.3} parent=5 // pred_check_branch
      %94 = sbr.rel (%p91) target = $region12
    $region11: #{sconv2d_forward.3} parent=5 // pred_region
      %s95 = ssub.s32 %s8, 1
      // Predicated region
      $region13: #{sconv2d_forward.3} parent=11 // pred_check
        %p96 = pneg %p55
      $region14: #{sconv2d_forward.3} parent=11 // pred_check_branch
        %98 = sbr.rel (%p96) target = $region16
      $region15: #{sconv2d_forward.3} parent=11 // pred_region
        _
      $region16: #{sconv2d_forward.3} parent=11 // pred_fallthru
        _
    $region12: #{sconv2d_forward.3} parent=5 // pred_fallthru
      _
    %p99 = scmp.lt.s32.totalorder %s8, 2
    // Predicated region
    $region17: #{sconv2d_forward.3} parent=5 // pred_check
      %p100 = pneg %p99
    $region18: #{sconv2d_forward.3} parent=5 // pred_check_branch
      %102 = sbr.rel (%p100) target = $region20
    $region19: #{sconv2d_forward.3} parent=5 // pred_region
      // Predicated region
      $region21: #{sconv2d_forward.3} parent=19 // pred_check
        %p103 = pneg %p28
      $region22: #{sconv2d_forward.3} parent=19 // pred_check_branch
        %105 = sbr.rel (%p103) target = $region24
      $region23: #{sconv2d_forward.3} parent=19 // pred_region
        %p106 = scmp.lt.s32.totalorder %s8, 1
        %s107 = scalar_select %p106, %s8, 1
        %s108 = smul.addr %s107, 2
        %s109 = smul.addr %s108, 8
        %s110 = scalar_lea.vmem %s0, %s109
      $region24: #{sconv2d_forward.3} parent=19 // pred_fallthru
        _
    $region20: #{sconv2d_forward.3} parent=5 // pred_fallthru
      _
    %p111 = scmp.le.s32.totalorder 1, %s8
    %p112 = scmp.lt.s32.totalorder %s8, 3
    %p113 = pnand %p111, %p112
    %p114 = pneg %p113
    // Predicated region
    $region25: #{sconv2d_forward.3} parent=5 // pred_check
      _
    $region26: #{sconv2d_forward.3} parent=5 // pred_check_branch
      %116 = sbr.rel (%p113) target = $region28
    $region27: #{sconv2d_forward.3} parent=5 // pred_region
      %s117 = ssub.s32 %s8, 1
      %p118 = scmp.lt.s32.totalorder %s13, 1
      %s119 = scalar_select %p118, %s13, 1
      %s120 = smul.addr %s119, 2
      %s121 = smul.addr %s120, 8
      %s122 = scalar_lea.vmem %s0, %s121
      %p123 = pneg %p34
      %p124 = pneg %p31
      %p125 = pneg %p55
      %p126 = pneg %p52
      %p127 = pneg %p81
      %p128 = pneg %p78
      %p129 = scmp.lt.s32.totalorder %s13, 1
      %s130 = scalar_select %p129, %s13, 1
      %s131 = smul.addr %s130, 2
      %s132 = smul.addr %s131, 8
      %s133 = scalar_lea.vmem %s2, %s132
      %p134 = scmp.lt.s32.totalorder %s13, 1
      %s135 = scalar_select %p134, %s13, 1
      %s136 = smul.addr %s135, 2
      %s137 = smul.addr %s136, 8
      %s138 = scalar_lea.vmem %s0, %s137
      %p139 = scmp.lt.s32.totalorder %s13, 1
      %s140 = scalar_select %p139, %s13, 1
      %s141 = smul.addr %s140, 2
      %s142 = smul.addr %s141, 8
      %s143 = scalar_lea.vmem %s2, %s142
      %v144 = vld [vmem:[%s1] sm:$0xff]
      %s145 = scalar_lea.vmem %s1, 8
      %v146 = vld [vmem:[%s145] sm:$0xff]
      %v147 = vld [vmem:[%s138] sm:$0xff]
      %v148 = vld [vmem:[%s138 + $0x8] sm:$0xff]
      %150 = vset.pattern.permute.xlu0 0
      %151 = vperm.xlu0 %150, %v144
      %v152 = vpop.permute.xlu0 %151
      %v154 = vsub.f32 %v147, %v152
      %v155 = vsub.f32 %v148, %v152
      %157 = vset.pattern.permute.xlu0 0
      %158 = vperm.xlu0 %157, %v146
      %v159 = vpop.permute.xlu0 %158
      %v161 = vmul.f32 %v154, %v159
      %v162 = vmul.f32 %v155, %v159
      %163 = vst [vmem:[%s143] sm:$0xff] %v161
      %164 = vst [vmem:[%s143 + $0x8] sm:$0xff] %v162
      %p165 = scmp.lt.s32.totalorder %s13, 1
      %s166 = scalar_select %p165, %s13, 1
      %s167 = smul.addr %s166, 2
      %s168 = smul.addr %s167, 8
      %s169 = scalar_lea.vmem %s2, %s168
      // Predicated region
      $region29: #{sconv2d_forward.3} parent=27 // pred_check
        %p170 = pneg %p78
      $region30: #{sconv2d_forward.3} parent=27 // pred_check_branch
        %172 = sbr.rel (%p170) target = $region32
      $region31: #{sconv2d_forward.3} parent=27 // pred_region
        _
      $region32: #{sconv2d_forward.3} parent=27 // pred_fallthru
        _
    $region28: #{sconv2d_forward.3} parent=5 // pred_fallthru
      _
    %p173 = scmp.le.s32.totalorder 2, %s8
    // Predicated region
    $region33: #{sconv2d_forward.3} parent=5 // pred_check
      %p174 = pneg %p173
    $region34: #{sconv2d_forward.3} parent=5 // pred_check_branch
      %176 = sbr.rel (%p174) target = $region36
    $region35: #{sconv2d_forward.3} parent=5 // pred_region
      %s177 = ssub.s32 %s8, 2
      // Predicated region
      $region37: #{sconv2d_forward.3} parent=35 // pred_check
        %p178 = pneg %p84
      $region38: #{sconv2d_forward.3} parent=35 // pred_check_branch
        %180 = sbr.rel (%p178) target = $region40
      $region39: #{sconv2d_forward.3} parent=35 // pred_region
        %p181 = scmp.lt.s32.totalorder %s14, 1
        %s182 = scalar_select %p181, %s14, 1
        %s183 = smul.addr %s182, 2
        %s184 = smul.addr %s183, 8
        %s185 = scalar_lea.vmem %s2, %s184
      $region40: #{sconv2d_forward.3} parent=35 // pred_fallthru
        _
    $region36: #{sconv2d_forward.3} parent=5 // pred_fallthru
      _
  $region6: #{sconv2d_forward.3} parent=0 // loop_footer
    %s12 = sadd.s32 1, %s8
  $region7: #{sconv2d_forward.3} parent=0 // loop_footer_branch
    %7 = sbr.rel target = $region3
  $region8: #{sconv2d_forward.3} parent=0 // loop_exit
    _

// kernel: sconv2d_forward.2
$region0: #{sconv2d_forward.2}
  #allocation0 [shape = 'u32[]', space=smem, size = 0x4, offset = 0x4, fixed_abs, tag = 'smem constant byte address 0x4 - core index']
  #allocation1 [shape = 'u32[144,128]{1,0:T(1,128)}', space=vmem, size = 0x12000, scoped, tag = 'internal scratch']
  #allocation2 [shape = 'f32[36,256]{1,0:T(8,128)}', space=vmem, size = 0xa000, scoped, tag = 'scratch operand']
  %s0 = inlined_call_operand.vmem [shape: f32[2,1,4,290], index: 0, kind: input, shape index: {}]
  %s1 = inlined_call_operand.vmem [shape: f32[8,36], index: 1, kind: input, shape index: {}]
  %s2 = inlined_call_operand.vmem [shape: f32[2,8,256], index: 2, kind: output, shape index: {0}]
  %s3 = inlined_call_operand.vmem [shape: f32[2,1,8,1], index: 3, kind: output, shape index: {1}]
  %s4 = inlined_call_operand.vmem [shape: f32[2,1,8,1], index: 4, kind: output, shape index: {2}]
  %5 = xla_tuple %s2, %s3, %s4
  %s6 = sld [smem:[#allocation0]]
  $region57: #{sconv2d_forward.2} parent=0
    _
  %s8 = ssub.s32 1, %s6
  %s9 = scalar_select 0, %s8, %s6
  loop: start=0, step=1, limit=4
  $region2: #{sconv2d_forward.2} parent=0 // loop_pre_header
    _
  $region3: #{sconv2d_forward.2} parent=0 // loop_header
    %s11 = sphi 0, %s15
    %p12 = scmp.ge.s32.totalorder %s11, 4
    %s18 = sphi 0, %s30
    %s19 = sphi 0, %s26
    %s20 = sphi 0, %s18
    %s21 = sphi 0, %s19
    %s22 = sphi 0, %s20
    %s23 = sphi 0, %s21
    %s35 = sphi 0, %s37
    %s38 = sphi 0, %s35
    %s39 = sphi 0, %s38
    %s55 = sphi 0, %s39
    %s59 = sphi 0, %s59
    %s61 = sphi 0, %s59
    %s62 = sphi 0, %s61
    %s76 = sphi 0, %s62
    %s84 = sphi 0, %s86
    %s87 = sphi 0, %s84
    %s88 = sphi 0, %s87
    %s104 = sphi 0, %s88
    %s112 = sphi 0, %s114
    %s115 = sphi 0, %s112
    %s116 = sphi 0, %s115
    %s132 = sphi 0, %s116
    %s140 = sphi 0, %s142
    %s143 = sphi 0, %s140
    %s144 = sphi 0, %s143
    %s160 = sphi 0, %s144
  $region4: #{sconv2d_forward.2} parent=0 // loop_header_branch
    %14 = sbr.rel (%p12) target = $region8
  $region5: #{sconv2d_forward.2} parent=0 // loop_body
    %s16 = ssub.s32 %s11, 1
    %s17 = ssub.s32 %s11, 2
    %s24 = sadd.s32 1, %s19
    %p25 = scmp.ge.s32.totalorder %s24, 1
    %s26 = scalar_select %p25, 0, %s24
    %s27 = sadd.s32 1, %s18
    %s28 = scalar_select %p25, %s27, %s18
    %p29 = scmp.ge.s32.totalorder %s28, 2
    %s30 = scalar_select %p29, 0, %s28
    %s31 = ssub.s32 %s18, %s30
    %s32 = ssub.s32 %s19, %s26
    %s33 = sor.u32 %s31, %s32
    %p34 = scmp.eq.s32.totalorder %s33, 0
    %s36 = sadd.s32 %s35, 1
    %s37 = scalar_select %p34, %s35, %s36
    %p40 = pneg %p34
    %p41 = scmp.eq.s32.totalorder %s11, 1
    %p42 = por %p40, %p41
    %p43 = scmp.ne.s32.totalorder %s35, %s38
    %p44 = scmp.eq.s32.totalorder %s11, 0
    %p45 = por %p43, %p44
    %p46 = scmp.ne.s32.totalorder %s35, %s38
    %p47 = scmp.eq.s32.totalorder %s16, 1
    %p48 = por %p46, %p47
    %p49 = scmp.ne.s32.totalorder %s38, %s39
    %p50 = scmp.eq.s32.totalorder %s16, 0
    %p51 = por %p49, %p50
    %p52 = scmp.ne.s32.totalorder %s38, %s39
    %p53 = scmp.eq.s32.totalorder %s17, 1
    %p54 = por %p52, %p53
    %p56 = scmp.ne.s32.totalorder %s39, %s55
    %p57 = scmp.eq.s32.totalorder %s17, 0
    %p58 = por %p56, %p57
    %s60 = sadd.s32 %s59, 1
    %p63 = scmp.eq.s32.totalorder %s11, 1
    %p64 = scmp.ne.s32.totalorder %s59, %s61
    %p65 = scmp.eq.s32.totalorder %s11, 0
    %p66 = por %p64, %p65
    %p67 = scmp.ne.s32.totalorder %s59, %s61
    %p68 = scmp.eq.s32.totalorder %s16, 1
    %p69 = por %p67, %p68
    %p70 = scmp.ne.s32.totalorder %s61, %s62
    %p71 = scmp.eq.s32.totalorder %s16, 0
    %p72 = por %p70, %p71
    %p73 = scmp.ne.s32.totalorder %s61, %s62
    %p74 = scmp.eq.s32.totalorder %s17, 1
    %p75 = por %p73, %p74
    %p77 = scmp.ne.s32.totalorder %s62, %s76
    %p78 = scmp.eq.s32.totalorder %s17, 0
    %p79 = por %p77, %p78
    %s80 = ssub.s32 %s18, %s30
    %s81 = ssub.s32 %s19, %s26
    %s82 = sor.u32 %s80, %s81
    %p83 = scmp.eq.s32.totalorder %s82, 0
    %s85 = sadd.s32 %s84, 1
    %s86 = scalar_select %p83, %s84, %s85
    %p89 = pneg %p83
    %p90 = scmp.eq.s32.totalorder %s11, 1
    %p91 = por %p89, %p90
    %p92 = scmp.ne.s32.totalorder %s84, %s87
    %p93 = scmp.eq.s32.totalorder %s11, 0
    %p94 = por %p92, %p93
    %p95 = scmp.ne.s32.totalorder %s84, %s87
    %p96 = scmp.eq.s32.totalorder %s16, 1
    %p97 = por %p95, %p96
    %p98 = scmp.ne.s32.totalorder %s87, %s88
    %p99 = scmp.eq.s32.totalorder %s16, 0
    %p100 = por %p98, %p99
    %p101 = scmp.ne.s32.totalorder %s87, %s88
    %p102 = scmp.eq.s32.totalorder %s17, 1
    %p103 = por %p101, %p102
    %p105 = scmp.ne.s32.totalorder %s88, %s104
    %p106 = scmp.eq.s32.totalorder %s17, 0
    %p107 = por %p105, %p106
    %s108 = ssub.s32 %s18, %s30
    %s109 = ssub.s32 %s19, %s26
    %s110 = sor.u32 %s108, %s109
    %p111 = scmp.eq.s32.totalorder %s110, 0
    %s113 = sadd.s32 %s112, 1
    %s114 = scalar_select %p111, %s112, %s113
    %p117 = pneg %p111
    %p118 = scmp.eq.s32.totalorder %s11, 1
    %p119 = por %p117, %p118
    %p120 = scmp.ne.s32.totalorder %s112, %s115
    %p121 = scmp.eq.s32.totalorder %s11, 0
    %p122 = por %p120, %p121
    %p123 = scmp.ne.s32.totalorder %s112, %s115
    %p124 = scmp.eq.s32.totalorder %s16, 1
    %p125 = por %p123, %p124
    %p126 = scmp.ne.s32.totalorder %s115, %s116
    %p127 = scmp.eq.s32.totalorder %s16, 0
    %p128 = por %p126, %p127
    %p129 = scmp.ne.s32.totalorder %s115, %s116
    %p130 = scmp.eq.s32.totalorder %s17, 1
    %p131 = por %p129, %p130
    %p133 = scmp.ne.s32.totalorder %s116, %s132
    %p134 = scmp.eq.s32.totalorder %s17, 0
    %p135 = por %p133, %p134
    %s136 = ssub.s32 %s18, %s30
    %s137 = ssub.s32 %s19, %s26
    %s138 = sor.u32 %s136, %s137
    %p139 = scmp.eq.s32.totalorder %s138, 0
    %s141 = sadd.s32 %s140, 1
    %s142 = scalar_select %p139, %s140, %s141
    %p145 = pneg %p139
    %p146 = scmp.eq.s32.totalorder %s11, 1
    %p147 = por %p145, %p146
    %p148 = scmp.ne.s32.totalorder %s140, %s143
    %p149 = scmp.eq.s32.totalorder %s11, 0
    %p150 = por %p148, %p149
    %p151 = scmp.ne.s32.totalorder %s140, %s143
    %p152 = scmp.eq.s32.totalorder %s16, 1
    %p153 = por %p151, %p152
    %p154 = scmp.ne.s32.totalorder %s143, %s144
    %p155 = scmp.eq.s32.totalorder %s16, 0
    %p156 = por %p154, %p155
    %p157 = scmp.ne.s32.totalorder %s143, %s144
    %p158 = scmp.eq.s32.totalorder %s17, 1
    %p159 = por %p157, %p158
    %p161 = scmp.ne.s32.totalorder %s144, %s160
    %p162 = scmp.eq.s32.totalorder %s17, 0
    %p163 = por %p161, %p162
    %p164 = scmp.le.s32.totalorder 1, %s11
    %p165 = scmp.lt.s32.totalorder %s11, 3
    %p166 = pnand %p164, %p165
    %p167 = pneg %p166
    // Predicated region
    $region9: #{sconv2d_forward.2} parent=5 // pred_check
      _
    $region10: #{sconv2d_forward.2} parent=5 // pred_check_branch
      %169 = sbr.rel (%p166) target = $region12
    $region11: #{sconv2d_forward.2} parent=5 // pred_region
      %s170 = ssub.s32 %s11, 1
      // Predicated region
      $region13: #{sconv2d_forward.2} parent=11 // pred_check
        %p171 = pneg %p72
      $region14: #{sconv2d_forward.2} parent=11 // pred_check_branch
        %173 = sbr.rel (%p171) target = $region16
      $region15: #{sconv2d_forward.2} parent=11 // pred_region
        _
      $region16: #{sconv2d_forward.2} parent=11 // pred_fallthru
        _
    $region12: #{sconv2d_forward.2} parent=5 // pred_fallthru
      _
    %p174 = scmp.lt.s32.totalorder %s11, 2
    // Predicated region
    $region17: #{sconv2d_forward.2} parent=5 // pred_check
      %p175 = pneg %p174
    $region18: #{sconv2d_forward.2} parent=5 // pred_check_branch
      %177 = sbr.rel (%p175) target = $region20
    $region19: #{sconv2d_forward.2} parent=5 // pred_region
      // Predicated region
      $region21: #{sconv2d_forward.2} parent=19 // pred_check
        %p178 = pneg %p45
      $region22: #{sconv2d_forward.2} parent=19 // pred_check_branch
        %180 = sbr.rel (%p178) target = $region24
      $region23: #{sconv2d_forward.2} parent=19 // pred_region
        %p181 = scmp.lt.s32.totalorder %s18, 1
        %s182 = scalar_select %p181, %s18, 1
        %p183 = scmp.lt.s32.totalorder %s19, 0
        %s184 = scalar_select %p183, %s19, 0
        %s185 = smul.addr %s184, 3
        %s186 = smul.addr %s182, 3
        %s187 = sadd.s32 %s185, %s186
        %s188 = smul.addr %s187, 4
        %s189 = scalar_lea.vmem %s0, %s188
      $region24: #{sconv2d_forward.2} parent=19 // pred_fallthru
        _
    $region20: #{sconv2d_forward.2} parent=5 // pred_fallthru
      _
    %p190 = scmp.le.s32.totalorder 1, %s11
    %p191 = scmp.lt.s32.totalorder %s11, 3
    %p192 = pnand %p190, %p191
    %p193 = pneg %p192
    // Predicated region
    $region25: #{sconv2d_forward.2} parent=5 // pred_check
      _
    $region26: #{sconv2d_forward.2} parent=5 // pred_check_branch
      %195 = sbr.rel (%p192) target = $region28
    $region27: #{sconv2d_forward.2} parent=5 // pred_region
      %s196 = ssub.s32 %s11, 1
      %p197 = scmp.lt.s32.totalorder %s20, 1
      %s198 = scalar_select %p197, %s20, 1
      %p199 = scmp.lt.s32.totalorder %s21, 0
      %s200 = scalar_select %p199, %s21, 0
      %s201 = smul.addr %s200, 3
      %s202 = smul.addr %s198, 3
      %s203 = sadd.s32 %s201, %s202
      %s204 = smul.addr %s203, 4
      %s205 = scalar_lea.vmem %s0, %s204
      %p206 = pneg %p51
      %p207 = pneg %p48
      %p208 = pneg %p72
      %p209 = pneg %p69
      %p210 = pneg %p100
      %p211 = pneg %p97
      %s212 = smul.u32 2, %s21
      %p213 = scmp.lt.s32.totalorder %s20, 1
      %s214 = scalar_select %p213, %s20, 1
      %p215 = scmp.lt.s32.totalorder %s212, 1
      %s216 = scalar_select %p215, %s212, 1
      %s217 = smul.addr %s214, 2
      %s218 = sadd.s32 %s216, %s217
      %s219 = smul.addr %s218, 8
      %s220 = scalar_lea.vmem %s2, %s219
      %p221 = pneg %p128
      %p222 = pneg %p125
      %p223 = scmp.lt.s32.totalorder %s20, 1
      %s224 = scalar_select %p223, %s20, 1
      %p225 = scmp.lt.s32.totalorder %s21, 0
      %s226 = scalar_select %p225, %s21, 0
      %s227 = sadd.s32 %s226, %s224
      %s228 = smul.addr %s227, 8
      %s229 = scalar_lea.vmem %s3, %s228
      %p230 = pneg %p156
      %p231 = pneg %p153
      %p232 = scmp.lt.s32.totalorder %s20, 1
      %s233 = scalar_select %p232, %s20, 1
      %p234 = scmp.lt.s32.totalorder %s21, 0
      %s235 = scalar_select %p234, %s21, 0
      %s236 = sadd.s32 %s235, %s233
      %s237 = smul.addr %s236, 8
      %s238 = scalar_lea.vmem %s4, %s237
      %p239 = scmp.lt.s32.totalorder %s20, 1
      %s240 = scalar_select %p239, %s20, 1
      %p241 = scmp.lt.s32.totalorder %s21, 0
      %s242 = scalar_select %p241, %s21, 0
      %s243 = smul.addr %s242, 3
      %s244 = smul.addr %s240, 3
      %s245 = sadd.s32 %s243, %s244
      %s246 = smul.addr %s245, 4
      %s247 = scalar_lea.vmem %s0, %s246
      %s248 = smul.u32 2, %s21
      %p249 = scmp.lt.s32.totalorder %s20, 1
      %s250 = scalar_select %p249, %s20, 1
      %p251 = scmp.lt.s32.totalorder %s248, 1
      %s252 = scalar_select %p251, %s248, 1
      %s253 = smul.addr %s250, 2
      %s254 = sadd.s32 %s252, %s253
      %s255 = smul.addr %s254, 8
      %s256 = scalar_lea.vmem %s2, %s255
      %s257 = smul.u32 2, %s21
      %p258 = scmp.lt.s32.totalorder %s20, 1
      %s259 = scalar_select %p258, %s20, 1
      %p260 = scmp.lt.s32.totalorder %s21, 0
      %s261 = scalar_select %p260, %s21, 0
      %s262 = sadd.s32 %s261, %s259
      %s263 = smul.addr %s262, 8
      %s264 = scalar_lea.vmem %s3, %s263
      %p265 = scmp.lt.s32.totalorder %s20, 1
      %s266 = scalar_select %p265, %s20, 1
      %p267 = scmp.lt.s32.totalorder %s21, 0
      %s268 = scalar_select %p267, %s21, 0
      %s269 = sadd.s32 %s268, %s266
      %s270 = smul.addr %s269, 8
      %s271 = scalar_lea.vmem %s4, %s270
      %v272 = vlaneseq
      %v273 = vand.u32 %v272, 127
      %v274 = vadd.s32 %v273, 128
      %v275 = vadd.s32 %v273, 256
      %vm276 = vcmp.lt.s32.totalorder %v273, 0
      %v277 = vsub.s32 0, %v273
      %v278 = vsel %vm276, %v277, %v273
      %v279 = vshrl.u32 %v278, 4
      %v280 = vand.u32 %v278, 15
      %v281 = vsub.s32 0, %v280
      %v282 = vsel %vm276, %v281, %v280
      %vm283 = vcmp.lt.s32.totalorder %v274, 0
      %v284 = vsub.s32 0, %v274
      %v285 = vsel %vm283, %v284, %v274
      %v286 = vshrl.u32 %v285, 4
      %v287 = vand.u32 %v285, 15
      %v288 = vsub.s32 0, %v287
      %v289 = vsel %vm283, %v288, %v287
      %vm290 = vcmp.lt.s32.totalorder %v275, 0
      %v291 = vsub.s32 0, %v275
      %v292 = vsel %vm290, %v291, %v275
      %v293 = vshrl.u32 %v292, 4
      %v294 = vand.u32 %v292, 15
      %v295 = vsub.s32 0, %v294
      %v296 = vsel %vm290, %v295, %v294
      %vm297 = vcmp.ne.s32.totalorder %v282, 0
      %vm298 = vcmp.ne.s32.totalorder %v289, 0
      %vm299 = vcmp.ne.s32.totalorder %v296, 0
      %vm300 = vcmp.lt.s32.totalorder %v282, 0
      %vm301 = vcmp.lt.s32.totalorder %v289, 0
      %vm302 = vcmp.lt.s32.totalorder %v296, 0
      %vm303 = vmand %vm300, %vm297
      %vm304 = vmand %vm301, %vm298
      %vm305 = vmand %vm302, %vm299
      %v306 = vadd.s32 %v282, 16
      %v307 = vadd.s32 %v289, 16
      %v308 = vadd.s32 %v296, 16
      %v309 = vsel %vm303, %v306, %v282
      %v310 = vsel %vm304, %v307, %v289
      %v311 = vsel %vm305, %v308, %v296
      %vm312 = vcmp.eq.s32.totalorder %v309, 0
      %vm313 = vcmp.eq.s32.totalorder %v310, 0
      %vm314 = vcmp.eq.s32.totalorder %v311, 0
      %vm315 = vcmp.eq.s32.totalorder %v309, 15
      %vm316 = vcmp.eq.s32.totalorder %v310, 15
      %vm317 = vcmp.eq.s32.totalorder %v311, 15
      %v318 = vld [vmem:[%s247] sm:$0xff]
      %v319 = vld [vmem:[%s247 + $0x8] sm:$0xf]
      %v321 = vcombine.high %v318, %v318
      %v323 = vsel %vm312, 0.0, %v318
      %v324 = vsel %vm313, 0.0, %v321
      %v325 = vsel %vm314, 0.0, %v319
      %326 = vst [vmem:[#allocation2] sm:$0xf] %v323
      %327 = vst [vmem:[#allocation2 + $0x8] sm:$0xf] %v324
      %v331 = vrot.slane %v323, 4
      %v332 = vrot.slane %v324, 4
      %v333 = vrot.slane %v325, 4
      %334 = vrot.lane.b32.xlu0 %v331, 112
      %v335 = vpop.permute.xlu0 %334
      %336 = vrot.lane.b32.xlu0 %v332, 112
      %v337 = vpop.permute.xlu0 %336
      %338 = vrot.lane.b32.xlu0 %v333, 112
      %v339 = vpop.permute.xlu0 %338
      %vm340 = vcmask 916480
      %v341 = vsel %vm340, %v335, %v337
      %v342 = vsel %vm340, %v337, %v339
      %345 = vst [vmem:[#allocation2 + $0x10] sm:$0xf0] %v341
      %346 = vst [vmem:[#allocation2 + $0x18] sm:$0xf0] %v342
      %347 = vrot.lane.b32.xlu0 %v323, 96
      %v348 = vpop.permute.xlu0 %347
      %349 = vrot.lane.b32.xlu0 %v324, 96
      %v350 = vpop.permute.xlu0 %349
      %351 = vrot.lane.b32.xlu0 %v325, 96
      %v352 = vpop.permute.xlu0 %351
      %vm353 = vcmask 785408
      %v354 = vsel %vm353, %v348, %v350
      %v355 = vsel %vm353, %v350, %v352
      %358 = vst [vmem:[#allocation2 + $0x30] sm:$0xf] %v354
      %359 = vst [vmem:[#allocation2 + $0x38] sm:$0xf] %v355
      %v360 = vld [vmem:[%s247] sm:$0xff]
      %v361 = vld [vmem:[%s247 + $0x8] sm:$0xf]
      %v364 = vcombine.low %v360, %v360
      %v365 = vcombine.low %v361, %v361
      %366 = vrot.lane.b32.xlu0 %v364, 127
      %v367 = vpop.permute.xlu0 %366
      %368 = vrot.lane.b32.xlu0 %v360, 127
      %v369 = vpop.permute.xlu0 %368
      %370 = vrot.lane.b32.xlu0 %v365, 127
      %v371 = vpop.permute.xlu0 %370
      %vm372 = vcmask 1039360
      %v373 = vsel %vm372, %v367, %v369
      %v374 = vsel %vm372, %v369, %v371
      %377 = vst [vmem:[#allocation2] sm:$0xf0] %v373
      %378 = vst [vmem:[#allocation2 + $0x8] sm:$0xf0] %v374
      %v379 = vcombine.high %v360, %v360
      %380 = vrot.lane.b32.xlu0 %v360, 111
      %v381 = vpop.permute.xlu0 %380
      %382 = vrot.lane.b32.xlu0 %v379, 111
      %v383 = vpop.permute.xlu0 %382
      %384 = vrot.lane.b32.xlu0 %v361, 111
      %v385 = vpop.permute.xlu0 %384
      %vm386 = vcmask 908288
      %v387 = vsel %vm386, %v381, %v383
      %v388 = vsel %vm386, %v383, %v385
      %391 = vst [vmem:[#allocation2 + $0x20] sm:$0xf] %v387
      %392 = vst [vmem:[#allocation2 + $0x28] sm:$0xf] %v388
      %393 = vrot.lane.b32.xlu0 %v364, 95
      %v394 = vpop.permute.xlu0 %393
      %395 = vrot.lane.b32.xlu0 %v360, 95
      %v396 = vpop.permute.xlu0 %395
      %397 = vrot.lane.b32.xlu0 %v365, 95
      %v398 = vpop.permute.xlu0 %397
      %vm399 = vcmask 777216
      %v400 = vsel %vm399, %v394, %v396
      %v401 = vsel %vm399, %v396, %v398
      %404 = vst [vmem:[#allocation2 + $0x30] sm:$0xf0] %v400
      %405 = vst [vmem:[#allocation2 + $0x38] sm:$0xf0] %v401
      %v406 = vld [vmem:[%s247] sm:$0xff]
      %v407 = vld [vmem:[%s247 + $0x8] sm:$0xf]
      %v410 = vcombine.high %v406, %v406
      %411 = vrot.lane.b32.xlu0 %v406, 126
      %v412 = vpop.permute.xlu0 %411
      %413 = vrot.lane.b32.xlu0 %v410, 126
      %v414 = vpop.permute.xlu0 %413
      %415 = vrot.lane.b32.xlu0 %v407, 126
      %v416 = vpop.permute.xlu0 %415
      %vm417 = vcmask 1031168
      %v418 = vsel %vm417, %v412, %v414
      %v419 = vsel %vm417, %v414, %v416
      %v423 = vsel %vm315, 0.0, %v418
      %v424 = vsel %vm316, 0.0, %v419
      %v425 = vsel %vm317, 0.0, %v416
      %426 = vst [vmem:[#allocation2 + $0x10] sm:$0xf] %v423
      %427 = vst [vmem:[#allocation2 + $0x18] sm:$0xf] %v424
      %v431 = vrot.slane %v423, 4
      %v432 = vrot.slane %v424, 4
      %v433 = vrot.slane %v425, 4
      %434 = vrot.lane.b32.xlu0 %v431, 112
      %v435 = vpop.permute.xlu0 %434
      %436 = vrot.lane.b32.xlu0 %v432, 112
      %v437 = vpop.permute.xlu0 %436
      %438 = vrot.lane.b32.xlu0 %v433, 112
      %v439 = vpop.permute.xlu0 %438
      %v440 = vsel %vm340, %v435, %v437
      %v441 = vsel %vm340, %v437, %v439
      %444 = vst [vmem:[#allocation2 + $0x20] sm:$0xf0] %v440
      %445 = vst [vmem:[#allocation2 + $0x28] sm:$0xf0] %v441
      %446 = vrot.lane.b32.xlu0 %v423, 96
      %v447 = vpop.permute.xlu0 %446
      %448 = vrot.lane.b32.xlu0 %v424, 96
      %v449 = vpop.permute.xlu0 %448
      %450 = vrot.lane.b32.xlu0 %v425, 96
      %v451 = vpop.permute.xlu0 %450
      %v452 = vsel %vm353, %v447, %v449
      %v453 = vsel %vm353, %v449, %v451
      %456 = vst [vmem:[#allocation2 + $0x40] sm:$0xf] %v452
      %457 = vst [vmem:[#allocation2 + $0x48] sm:$0xf] %v453
      %v458 = vld [vmem:[%s1] sm:$0xff]
      %v459 = vld [vmem:[#allocation2] sm:$0xff]
      %v460 = vld [vmem:[#allocation2 + $0x8] sm:$0xff]
      %v461 = vld [vmem:[#allocation2 + $0x10] sm:$0xff]
      %v462 = vld [vmem:[#allocation2 + $0x18] sm:$0xff]
      %v463 = vld [vmem:[#allocation2 + $0x20] sm:$0xff]
      %v464 = vld [vmem:[#allocation2 + $0x28] sm:$0xff]
      %v465 = vld [vmem:[#allocation2 + $0x30] sm:$0xff]
      %v466 = vld [vmem:[#allocation2 + $0x38] sm:$0xff]
      %v467 = vld [vmem:[#allocation2 + $0x40] sm:$0xf]
      %v468 = vld [vmem:[#allocation2 + $0x48] sm:$0xf]
      %vm469 = vcmask 293888
      %v471 = vsel %vm469, %v458, 0
      %vm473 = vcmask 1043456
      %v475 = vsel %vm473, %v467, 0
      %v478 = vsel %vm473, %v468, 0
      %480 = vmatprep.subr.mxu0 0.0
      %481 = vmatpush1.msra.mxu0 0.0
      %482 = vmatprep.subr.mxu0 0.0
      %483 = vmatpush1.msra.mxu0 0.0
      %484 = vmatprep.subr.mxu0 0.0
      %485 = vmatpush1.msra.mxu0 0.0
      %486 = vmatprep.subr.mxu0 0.0
      %487 = vmatpush1.msra.mxu0 0.0
      %488 = vmatprep.subr.mxu0 0.0
      %489 = vmatpush1.msra.mxu0 0.0
      %490 = vmatprep.subr.mxu0 0.0
      %491 = vmatpush1.msra.mxu0 0.0
      %492 = vmatprep.subr.mxu0 0.0
      %493 = vmatpush1.msra.mxu0 0.0
      %494 = vmatprep.subr.mxu0 0.0
      %495 = vmatpush1.msra.mxu0 0.0
      %496 = vmatprep.subr.mxu0 0.0
      %497 = vmatpush1.msra.mxu0 0.0
      %498 = vmatprep.subr.mxu0 0.0
      %499 = vmatpush1.msra.mxu0 0.0
      %500 = vmatprep.subr.mxu0 0.0
      %501 = vmatpush1.msra.mxu0 0.0
      %502 = vmatprep.subr.mxu0 %v478
      %503 = vmatpush1.msra.mxu0 %v475
      %504 = vmatprep.subr.mxu0 %v466
      %505 = vmatpush1.msra.mxu0 %v465
      %506 = vmatprep.subr.mxu0 %v464
      %507 = vmatpush1.msra.mxu0 %v463
      %508 = vmatprep.subr.mxu0 %v462
      %509 = vmatpush1.msra.mxu0 %v461
      %510 = vmatprep.subr.mxu0 %v460
      %511 = vmatpush1.msra.mxu0 %v459
      %512 = vmatprep.subr.mxu0 0.0
      %513 = vmatpush2.msra.mxu0 0.0
      %514 = vmatprep.subr.mxu0 0.0
      %515 = vmatpush2.msra.mxu0 0.0
      %516 = vmatprep.subr.mxu0 0.0
      %517 = vmatpush2.msra.mxu0 0.0
      %518 = vmatprep.subr.mxu0 0.0
      %519 = vmatpush2.msra.mxu0 0.0
      %520 = vmatprep.subr.mxu0 0.0
      %521 = vmatpush2.msra.mxu0 0.0
      %522 = vmatprep.subr.mxu0 0.0
      %523 = vmatpush2.msra.mxu0 0.0
      %524 = vmatprep.subr.mxu0 0.0
      %525 = vmatpush2.msra.mxu0 0.0
      %526 = vmatprep.subr.mxu0 0.0
      %527 = vmatpush2.msra.mxu0 0.0
      %528 = vmatprep.subr.mxu0 0.0
      %529 = vmatpush2.msra.mxu0 0.0
      %530 = vmatprep.subr.mxu0 0.0
      %531 = vmatpush2.msra.mxu0 0.0
      %532 = vmatprep.subr.mxu0 0.0
      %533 = vmatpush2.msra.mxu0 0.0
      %534 = vmatprep.subr.mxu0 0.0
      %535 = vmatpush2.msra.mxu0 0.0
      %536 = vmatprep.subr.mxu0 0.0
      %537 = vmatpush2.msra.mxu0 0.0
      %538 = vmatprep.subr.mxu0 0.0
      %539 = vmatpush2.msra.mxu0 0.0
      %540 = vmatprep.subr.mxu0 0.0
      %541 = vmatpush2.msra.mxu0 0.0
      %542 = vmatprep.subr.mxu0 0.0
      %543 = vmatpush2.msra.mxu0 0.0
      %544 = vmatprep.mubr.f32.mxu0 0.0
      %545 = vmatmul.mubr.f32.gmra.mxu0 %v471
      %v546 = vpop.f32.mrf.mxu0
      %v547 = vadd.f32 0.0, %v546
      %v548 = vpop.f32.mrf.mxu0
      %v549 = vadd.f32 0.0, %v548
      %550 = vdwg.mxu0
      %v551 = vmax.f32 %v547, 0.0
      %v552 = vmax.f32 %v549, 0.0
      %553 = vst [vmem:[%s256] sm:$0xff] %v551
      %554 = vst [vmem:[%s256 + $0x8] sm:$0xff] %v552
      %v555 = vadd.f32 %v551, %v552
      %556 = vadd.xlane.f32.xlu0 %v555
      %v557 = vpop.xlane.xlu0 %556
      %vm558 = vcmask 7168
      %559 = vst.msk [vmem:[%s264] sm:$0xff] %vm558, %v557
      %v560 = vmul.f32 %v551, %v551
      %v561 = vmul.f32 %v552, %v552
      %v562 = vadd.f32 %v560, %v561
      %563 = vadd.xlane.f32.xlu0 %v562
      %v564 = vpop.xlane.xlu0 %563
      %565 = vst.msk [vmem:[%s271] sm:$0xff] %vm558, %v564
      %s566 = smul.u32 2, %s21
      %p567 = scmp.lt.s32.totalorder %s20, 1
      %s568 = scalar_select %p567, %s20, 1
      %p569 = scmp.lt.s32.totalorder %s566, 1
      %s570 = scalar_select %p569, %s566, 1
      %s571 = smul.addr %s568, 2
      %s572 = sadd.s32 %s570, %s571
      %s573 = smul.addr %s572, 8
      %s574 = scalar_lea.vmem %s2, %s573
      %p575 = scmp.lt.s32.totalorder %s20, 1
      %s576 = scalar_select %p575, %s20, 1
      %p577 = scmp.lt.s32.totalorder %s21, 0
      %s578 = scalar_select %p577, %s21, 0
      %s579 = sadd.s32 %s578, %s576
      %s580 = smul.addr %s579, 8
      %s581 = scalar_lea.vmem %s3, %s580
      %p582 = scmp.lt.s32.totalorder %s20, 1
      %s583 = scalar_select %p582, %s20, 1
      %p584 = scmp.lt.s32.totalorder %s21, 0
      %s585 = scalar_select %p584, %s21, 0
      %s586 = sadd.s32 %s585, %s583
      %s587 = smul.addr %s586, 8
      %s588 = scalar_lea.vmem %s4, %s587
      // Predicated region
      $region29: #{sconv2d_forward.2} parent=27 // pred_check
        %p589 = pneg %p97
      $region30: #{sconv2d_forward.2} parent=27 // pred_check_branch
        %591 = sbr.rel (%p589) target = $region32
      $region31: #{sconv2d_forward.2} parent=27 // pred_region
        %s592 = smul.u32 2, %s21
      $region32: #{sconv2d_forward.2} parent=27 // pred_fallthru
        _
      // Predicated region
      $region33: #{sconv2d_forward.2} parent=27 // pred_check
        %p593 = pneg %p125
      $region34: #{sconv2d_forward.2} parent=27 // pred_check_branch
        %595 = sbr.rel (%p593) target = $region36
      $region35: #{sconv2d_forward.2} parent=27 // pred_region
        _
      $region36: #{sconv2d_forward.2} parent=27 // pred_fallthru
        _
      // Predicated region
      $region37: #{sconv2d_forward.2} parent=27 // pred_check
        %p596 = pneg %p153
      $region38: #{sconv2d_forward.2} parent=27 // pred_check_branch
        %598 = sbr.rel (%p596) target = $region40
      $region39: #{sconv2d_forward.2} parent=27 // pred_region
        _
      $region40: #{sconv2d_forward.2} parent=27 // pred_fallthru
        _
    $region28: #{sconv2d_forward.2} parent=5 // pred_fallthru
      _
    %p599 = scmp.le.s32.totalorder 2, %s11
    // Predicated region
    $region41: #{sconv2d_forward.2} parent=5 // pred_check
      %p600 = pneg %p599
    $region42: #{sconv2d_forward.2} parent=5 // pred_check_branch
      %602 = sbr.rel (%p600) target = $region44
    $region43: #{sconv2d_forward.2} parent=5 // pred_region
      %s603 = ssub.s32 %s11, 2
      // Predicated region
      $region45: #{sconv2d_forward.2} parent=43 // pred_check
        %p604 = pneg %p103
      $region46: #{sconv2d_forward.2} parent=43 // pred_check_branch
        %606 = sbr.rel (%p604) target = $region48
      $region47: #{sconv2d_forward.2} parent=43 // pred_region
        %s607 = smul.u32 2, %s23
        %p608 = scmp.lt.s32.totalorder %s22, 1
        %s609 = scalar_select %p608, %s22, 1
        %p610 = scmp.lt.s32.totalorder %s607, 1
        %s611 = scalar_select %p610, %s607, 1
        %s612 = smul.addr %s609, 2
        %s613 = sadd.s32 %s611, %s612
        %s614 = smul.addr %s613, 8
        %s615 = scalar_lea.vmem %s2, %s614
      $region48: #{sconv2d_forward.2} parent=43 // pred_fallthru
        _
      // Predicated region
      $region49: #{sconv2d_forward.2} parent=43 // pred_check
        %p616 = pneg %p131
      $region50: #{sconv2d_forward.2} parent=43 // pred_check_branch
        %618 = sbr.rel (%p616) target = $region52
      $region51: #{sconv2d_forward.2} parent=43 // pred_region
        %p619 = scmp.lt.s32.totalorder %s22, 1
        %s620 = scalar_select %p619, %s22, 1
        %p621 = scmp.lt.s32.totalorder %s23, 0
        %s622 = scalar_select %p621, %s23, 0
        %s623 = sadd.s32 %s622, %s620
        %s624 = smul.addr %s623, 8
        %s625 = scalar_lea.vmem %s3, %s624
      $region52: #{sconv2d_forward.2} parent=43 // pred_fallthru
        _
      // Predicated region
      $region53: #{sconv2d_forward.2} parent=43 // pred_check
        %p626 = pneg %p159
      $region54: #{sconv2d_forward.2} parent=43 // pred_check_branch
        %628 = sbr.rel (%p626) target = $region56
      $region55: #{sconv2d_forward.2} parent=43 // pred_region
        %p629 = scmp.lt.s32.totalorder %s22, 1
        %s630 = scalar_select %p629, %s22, 1
        %p631 = scmp.lt.s32.totalorder %s23, 0
        %s632 = scalar_select %p631, %s23, 0
        %s633 = sadd.s32 %s632, %s630
        %s634 = smul.addr %s633, 8
        %s635 = scalar_lea.vmem %s4, %s634
      $region56: #{sconv2d_forward.2} parent=43 // pred_fallthru
        _
    $region44: #{sconv2d_forward.2} parent=5 // pred_fallthru
      _
  $region6: #{sconv2d_forward.2} parent=0 // loop_footer
    %s15 = sadd.s32 1, %s11
  $region7: #{sconv2d_forward.2} parent=0 // loop_footer_branch
    %10 = sbr.rel target = $region3
  $region8: #{sconv2d_forward.2} parent=0 // loop_exit
    _

</llo_original>
